<compile_context>
chip_gen: v6e
topology: v6e:2x2x1
jax: 0.10.0
libtpu: 0.0.40
codegen_flags: <defaults>
</compile_context>

<pallas_src>
import functools

import jax
import jax.numpy as jnp
from jax.experimental import pallas as pl
from jax.experimental.pallas import tpu as pltpu


def _round_up(n, m):
    return ((n + m - 1) // m) * m


def _linear_kernel(x_ref, w_ref, b_ref, o_ref, *, packed):
    # x_ref: (tile, Dp) VMEM (f32 or bf16); w_ref: f32 VMEM; b_ref: (1,) f32 SMEM;
    # o_ref: (tile, out_cols) f32 VMEM.
    x = x_ref[...].astype(jnp.float32)
    w = w_ref[...].astype(jnp.float32)
    if packed:
        # (tile, 128) @ (128, pack) block-diagonal weight: one MXU pass does the
        # per-sample multiply and the segmented D-lane reduction at once.
        o_ref[...] = jnp.dot(x, w, preferred_element_type=jnp.float32) + b_ref[0]
    else:
        # GEMV fallback (output width 1): VPU multiply + XLU lane reduce.
        o_ref[...] = jnp.sum(x * w, axis=-1, keepdims=True) + b_ref[0]


def ct_slices_forward(x, w_row, b, *, target_tile_bytes=4 << 20, min_grid=2):
    """Forward pass of CTslicesModel: x @ w_row.T + b.

    x     : (B, D) float32 or bfloat16
    w_row : (1, D) float32   (nn.Linear(D, 1).weight)
    b     : (1,)   float32   (nn.Linear(D, 1).bias)
    returns (B, 1) float32
    """
    B, D = x.shape
    assert w_row.shape == (1, D)
    assert b.shape == (1,)

    itemsize = jnp.dtype(x.dtype).itemsize
    sub = max(8, 32 // itemsize)          # sublane multiple: 8 (f32) / 16 (bf16)

    # Pack `pack` samples side-by-side on the lane axis so vregs are lane-dense
    # (D=32 -> pack=4, Dp=128). The reshape is free (contiguous, row-major).
    pack = 128 // D if (0 < D <= 128 and 128 % D == 0) else 1
    while pack > 1 and B % pack:
        pack //= 2
    Dp = pack * D
    rows = B // pack
    x_r = x.reshape(rows, Dp)

    if pack > 1:
        # Block-diagonal weight (Dp, pack): column j holds w in rows [j*D,(j+1)*D),
        # so x_r @ w_k computes each packed sample's dot product with w.
        w_k = jnp.kron(jnp.eye(pack, dtype=jnp.float32),
                       w_row.reshape(D, 1).astype(jnp.float32))
        out_cols = pack
    else:
        w_k = w_row.astype(jnp.float32)   # (1, D), broadcasts along sublanes
        out_cols = 1

    # Tile selection: MiB-scale steps; but keep >= min_grid steps when there is
    # enough work so v7x can shard the batch axis across both TensorCores.
    row_bytes = Dp * itemsize
    if rows <= 2 * sub:
        tile = rows                                        # one tiny full-dim block
    else:
        tile = _round_up(pl.cdiv(rows, min_grid), sub)     # aim for min_grid steps
        cap = _round_up(max(target_tile_bytes // row_bytes, sub), sub)
        tile = min(tile, cap)                              # cap per-step VMEM
    grid = pl.cdiv(rows, tile)                             # ragged tail: clipped

    # Only what this kernel needs (double-buffered x/out tiles + tiny weight).
    vmem_need = 2 * tile * Dp * itemsize + 2 * tile * out_cols * 4 + 2 * w_k.size * 4
    vmem_limit = int(max(4 << 20, vmem_need + (1 << 20)))

    cost = pl.CostEstimate(
        flops=2 * B * D,
        transcendentals=0,
        bytes_accessed=B * D * itemsize + w_k.size * 4 + 4 + B * 4,
    )

    out = pl.pallas_call(
        functools.partial(_linear_kernel, packed=(pack > 1)),
        out_shape=jax.ShapeDtypeStruct((rows, out_cols), jnp.float32),
        grid=(grid,),
        in_specs=[
            pl.BlockSpec((tile, Dp), lambda i: (i, 0)),          # x: streamed tiles
            pl.BlockSpec(w_k.shape, lambda i: (0, 0)),           # weight: resident
            pl.BlockSpec(memory_space=pltpu.MemorySpace.SMEM),   # bias: SMEM scalar
        ],
        out_specs=pl.BlockSpec((tile, out_cols), lambda i: (i, 0)),
        compiler_params=pltpu.CompilerParams(
            dimension_semantics=("parallel",),   # shard batch across v7x TCs
            vmem_limit_bytes=vmem_limit,
        ),
        cost_estimate=cost,
    )(x_r, w_k, b.astype(jnp.float32))

    return out.reshape(B, 1)


if __name__ == "__main__":
    input_size = 32    # feature columns after dropping 'patientId'
    output_size = 1    # ['reference']
    batch = 8          # batch_size in the training script

    key = jax.random.PRNGKey(0)
    kx, kw, kb, kx2 = jax.random.split(key, 4)

    # nn.Linear(input_size, 1) init: U(-1/sqrt(in), 1/sqrt(in)).
    bound = 1.0 / (input_size ** 0.5)
    w_row = jax.random.uniform(
        kw, (output_size, input_size), jnp.float32, minval=-bound, maxval=bound)
    bias = jax.random.uniform(
        kb, (output_size,), jnp.float32, minval=-bound, maxval=bound)

    # Literal module shapes (batch=8, D=32) -> single packed tile, grid=1.
    x = jax.random.normal(kx, (batch, input_size), jnp.float32)
    out = ct_slices_forward(x, w_row, bias)
    jax.block_until_ready(out)
    ref = x @ w_row.T + bias[None, :]
    assert out.shape == (batch, output_size)
    assert jnp.allclose(out, ref, atol=1e-4, rtol=1e-4)

    # Ragged larger batch: exercises the cdiv grid + clipped tail (no host pad).
    big = 1000
    x2 = jax.random.normal(kx2, (big, input_size), jnp.float32)
    out2 = ct_slices_forward(x2, w_row, bias)
    jax.block_until_ready(out2)
    ref2 = x2 @ w_row.T + bias[None, :]
    assert out2.shape == (big, output_size)
    assert jnp.allclose(out2, ref2, atol=1e-4, rtol=1e-4)

    # bf16 feed (halves the x HBM stream on v6e/v7x); kernel accumulates in f32.
    out3 = ct_slices_forward(x2.astype(jnp.bfloat16), w_row, bias)
    jax.block_until_ready(out3)
    assert out3.shape == (big, output_size)
    assert jnp.allclose(out3, ref2, atol=5e-2, rtol=5e-2)

    print("KERNEL_OK")
</pallas_src>

<mosaic_0001>
module attributes {stable_mosaic.version = 11 : i64} {
  func.func @_linear_kernel(%arg0: i32, %arg1: memref<2x128xf32, #tpu.memory_space<vmem>>, %arg2: memref<128x4xf32, #tpu.memory_space<vmem>>, %arg3: memref<1xf32, #tpu.memory_space<smem>>, %arg4: memref<2x4xf32, #tpu.memory_space<vmem>>) attributes {dimension_semantics = [#tpu.dimension_semantics<parallel>], iteration_bounds = array<i64: 1>, scalar_prefetch = 0 : i64, scratch_operands = 0 : i64, tpu.core_type = #tpu.core_type<tc>, window_params = [{transform_indices = @transform_0, window_bounds = array<i64: 2, 128>}, {pipeline_mode = #tpu.pipeline_mode<synchronous>, transform_indices = @transform_1, window_bounds = array<i64: 128, 4>}, {transform_indices = @transform_2, window_bounds = array<i64: 1>}, {transform_indices = @transform_3, window_bounds = array<i64: 2, 4>}]} {
    %c0 = arith.constant 0 : index
    %c0_0 = arith.constant 0 : index
    %0 = vector.load %arg1[%c0, %c0_0] : memref<2x128xf32, #tpu.memory_space<vmem>>, vector<2x128xf32>
    %c0_1 = arith.constant 0 : index
    %c0_2 = arith.constant 0 : index
    %1 = vector.load %arg2[%c0_1, %c0_2] : memref<128x4xf32, #tpu.memory_space<vmem>>, vector<128x4xf32>
    %cst = arith.constant dense<0.000000e+00> : vector<2x4xf32>
    %2 = tpu.matmul %0, %1, %cst {dimension_numbers = #tpu.dot_dimension_numbers<[1], [0], [0], [1], [0, 0, 1, 1], [], []>} : vector<2x128xf32>, vector<128x4xf32>, vector<2x4xf32> -> vector<2x4xf32>
    %c0_3 = arith.constant 0 : index
    %3 = memref.load %arg3[%c0_3] : memref<1xf32, #tpu.memory_space<smem>>
    %4 = vector.broadcast %3 : f32 to vector<2x4xf32>
    %5 = arith.addf %2, %4 : vector<2x4xf32>
    %c0_4 = arith.constant 0 : index
    %c0_5 = arith.constant 0 : index
    %6 = vector.load %arg4[%c0_4, %c0_5] : memref<2x4xf32, #tpu.memory_space<vmem>>, vector<2x4xf32>
    tpu.vector_store %arg4[%c0_4, %c0_5], %5 {strides = array<i32>} : memref<2x4xf32, #tpu.memory_space<vmem>>, vector<2x4xf32>,
    return
  }
  func.func @transform_0(%arg0: i32) -> (i32, i32) {
    %c0_i32 = arith.constant 0 : i32
    %c0_i32_0 = arith.constant 0 : i32
    return %arg0, %c0_i32 : i32, i32
  }
  func.func @transform_1(%arg0: i32) -> (i32, i32) {
    %c0_i32 = arith.constant 0 : i32
    %c0_i32_0 = arith.constant 0 : i32
    %c0_i32_1 = arith.constant 0 : i32
    return %c0_i32, %c0_i32_0 : i32, i32
  }
  func.func @transform_2(%arg0: i32) -> i32 {
    %c0_i32 = arith.constant 0 : i32
    %c0_i32_0 = arith.constant 0 : i32
    return %c0_i32 : i32
  }
  func.func @transform_3(%arg0: i32) -> (i32, i32) {
    %c0_i32 = arith.constant 0 : i32
    %c0_i32_0 = arith.constant 0 : i32
    return %arg0, %c0_i32 : i32, i32
  }
}

</mosaic_0001>

<llo_original>
// kernel: tpu_custom_call.1
$region0: #{tpu_custom_call.1}
  #allocation0 [shape = 'u32[]', space=smem, size = 0x4, offset = 0x4, fixed_abs, tag = 'smem constant byte address 0x4 - core index']
  #allocation1 [shape = 'u32[144,128]{1,0:T(1,128)}', space=vmem, size = 0x12000, scoped, tag = 'internal scratch']
  #allocation2 [shape = 'f32[1]{0:T(128)S(6)}', space=smem, size = 0x200, scoped, tag = 'scoped memory for tpu_custom_call.1']
  %s0 = inlined_call_operand.vmem [shape: f32[2,128], index: 0, kind: input, shape index: {}]
  %s1 = inlined_call_operand.vmem [shape: f32[128,4], index: 1, kind: input, shape index: {}]
  %s2 = inlined_call_operand.<no memory space> [shape: f32[1], index: 2, kind: input, shape index: {}]
  %s3 = inlined_call_operand.hbm [shape: f32[2,4], index: 3, kind: output, shape index: {}]
  %s4 = sld [smem:[#allocation0]]
  $region22: #{tpu_custom_call.1} parent=0
    _
  %s6 = ssub.s32 1, %s4
  %s7 = scalar_select 0, %s6, %s4
  %8 = sst [smem:[#allocation2]] %s2
  $region1: #{tpu_custom_call.1} parent=0
    #allocation3 [shape = 'u8[1024]{0}', space=vmem, size = 0x400, scoped, tag = 'output window, operand 0, single buffered']
    #allocation4 [shape = 's32[1]{0}', space=sflag, size = 0x4, scoped, tag = 'scoped memory for tpu_custom_call.1']
    %9 = vsyncpa [#allocation4], 0
    // Predicated region
    $region2: #{tpu_custom_call.1} parent=1 // pred_check
      _
    $region3: #{tpu_custom_call.1} parent=1 // pred_check_branch
      %11 = sbr.rel (0) target = $region5
    $region4: #{tpu_custom_call.1} parent=1 // pred_region
      _
    $region5: #{tpu_custom_call.1} parent=1 // pred_fallthru
      _
    // Predicated region
    $region6: #{tpu_custom_call.1} parent=1 // pred_check
      _
    $region7: #{tpu_custom_call.1} parent=1 // pred_check_branch
      %13 = sbr.rel (0) target = $region9
    $region8: #{tpu_custom_call.1} parent=1 // pred_region
      _
    $region9: #{tpu_custom_call.1} parent=1 // pred_fallthru
      _
    // Predicated region
    $region10: #{tpu_custom_call.1} parent=1 // pred_check
      _
    $region11: #{tpu_custom_call.1} parent=1 // pred_check_branch
      %15 = sbr.rel (0) target = $region13
    $region12: #{tpu_custom_call.1} parent=1 // pred_region
      _
    $region13: #{tpu_custom_call.1} parent=1 // pred_fallthru
      _
    %v16 = vld [vmem:[%s0] sm:$0x3]
    %v17 = vld [vmem:[%s1] sm:$0xff]
    %v18 = vld [vmem:[%s1 + $0x8] sm:$0xff]
    %v19 = vld [vmem:[%s1 + $0x10] sm:$0xff]
    %v20 = vld [vmem:[%s1 + $0x18] sm:$0xff]
    %v21 = vld [vmem:[%s1 + $0x20] sm:$0xff]
    %v22 = vld [vmem:[%s1 + $0x28] sm:$0xff]
    %v23 = vld [vmem:[%s1 + $0x30] sm:$0xff]
    %v24 = vld [vmem:[%s1 + $0x38] sm:$0xff]
    %v25 = vld [vmem:[%s1 + $0x40] sm:$0xff]
    %v26 = vld [vmem:[%s1 + $0x48] sm:$0xff]
    %v27 = vld [vmem:[%s1 + $0x50] sm:$0xff]
    %v28 = vld [vmem:[%s1 + $0x58] sm:$0xff]
    %v29 = vld [vmem:[%s1 + $0x60] sm:$0xff]
    %v30 = vld [vmem:[%s1 + $0x68] sm:$0xff]
    %v31 = vld [vmem:[%s1 + $0x70] sm:$0xff]
    %v32 = vld [vmem:[%s1 + $0x78] sm:$0xff]
    %s33 = sld [smem:[#allocation2]]
    %v34 = vstv %s33
    %35 = vmatprep.subr.mxu0 0.0
    %36 = vmatpush1.msra.mxu0 %v32
    %37 = vmatprep.subr.mxu0 0.0
    %38 = vmatpush1.msra.mxu0 %v31
    %39 = vmatprep.subr.mxu0 0.0
    %40 = vmatpush1.msra.mxu0 %v30
    %41 = vmatprep.subr.mxu0 0.0
    %42 = vmatpush1.msra.mxu0 %v29
    %43 = vmatprep.subr.mxu0 0.0
    %44 = vmatpush1.msra.mxu0 %v28
    %45 = vmatprep.subr.mxu0 0.0
    %46 = vmatpush1.msra.mxu0 %v27
    %47 = vmatprep.subr.mxu0 0.0
    %48 = vmatpush1.msra.mxu0 %v26
    %49 = vmatprep.subr.mxu0 0.0
    %50 = vmatpush1.msra.mxu0 %v25
    %51 = vmatprep.subr.mxu0 0.0
    %52 = vmatpush1.msra.mxu0 %v24
    %53 = vmatprep.subr.mxu0 0.0
    %54 = vmatpush1.msra.mxu0 %v23
    %55 = vmatprep.subr.mxu0 0.0
    %56 = vmatpush1.msra.mxu0 %v22
    %57 = vmatprep.subr.mxu0 0.0
    %58 = vmatpush1.msra.mxu0 %v21
    %59 = vmatprep.subr.mxu0 0.0
    %60 = vmatpush1.msra.mxu0 %v20
    %61 = vmatprep.subr.mxu0 0.0
    %62 = vmatpush1.msra.mxu0 %v19
    %63 = vmatprep.subr.mxu0 0.0
    %64 = vmatpush1.msra.mxu0 %v18
    %65 = vmatprep.subr.mxu0 0.0
    %66 = vmatpush1.msra.mxu0 %v17
    %67 = vmatprep.subr.mxu0 0.0
    %68 = vmatpush2.msra.mxu0 0.0
    %69 = vmatprep.subr.mxu0 0.0
    %70 = vmatpush2.msra.mxu0 0.0
    %71 = vmatprep.subr.mxu0 0.0
    %72 = vmatpush2.msra.mxu0 0.0
    %73 = vmatprep.subr.mxu0 0.0
    %74 = vmatpush2.msra.mxu0 0.0
    %75 = vmatprep.subr.mxu0 0.0
    %76 = vmatpush2.msra.mxu0 0.0
    %77 = vmatprep.subr.mxu0 0.0
    %78 = vmatpush2.msra.mxu0 0.0
    %79 = vmatprep.subr.mxu0 0.0
    %80 = vmatpush2.msra.mxu0 0.0
    %81 = vmatprep.subr.mxu0 0.0
    %82 = vmatpush2.msra.mxu0 0.0
    %83 = vmatprep.subr.mxu0 0.0
    %84 = vmatpush2.msra.mxu0 0.0
    %85 = vmatprep.subr.mxu0 0.0
    %86 = vmatpush2.msra.mxu0 0.0
    %87 = vmatprep.subr.mxu0 0.0
    %88 = vmatpush2.msra.mxu0 0.0
    %89 = vmatprep.subr.mxu0 0.0
    %90 = vmatpush2.msra.mxu0 0.0
    %91 = vmatprep.subr.mxu0 0.0
    %92 = vmatpush2.msra.mxu0 0.0
    %93 = vmatprep.subr.mxu0 0.0
    %94 = vmatpush2.msra.mxu0 0.0
    %95 = vmatprep.subr.mxu0 0.0
    %96 = vmatpush2.msra.mxu0 0.0
    %97 = vmatprep.subr.mxu0 0.0
    %98 = vmatpush2.msra.mxu0 0.0
    %99 = vmatprep.mubr.f32.mxu0 0.0
    %100 = vmatmul.mubr.f32.gmra.mxu0 %v16
    %v101 = vpop.f32.mrf.mxu0
    %v102 = vadd.f32 %v34, %v101
    %v103 = vpop.f32.mrf.mxu0
    %104 = vdwg.mxu0
    %vm105 = vcmask 25600
    %106 = vst.msk [vmem:[#allocation3] sm:$0x3] %vm105, %v102
    // Predicated region
    $region14: #{tpu_custom_call.1} parent=1 // pred_check
      _
    $region15: #{tpu_custom_call.1} parent=1 // pred_check_branch
      %108 = sbr.rel (0) target = $region17
    $region16: #{tpu_custom_call.1} parent=1 // pred_region
      %s110 = ssub.s32 32, 32
      %111 = vsyncadd [#allocation4], %s110
      %s113 = sshll.u32 [#allocation3], 4
      %s114 = int_to_ptr.vmem [resolvable:$true] %s113
      %116 = dma.vmem_to_hbm [thread:$0]  %s114, 32, %s3, [#allocation4]
    $region17: #{tpu_custom_call.1} parent=1 // pred_fallthru
      _
    // Predicated region
    $region18: #{tpu_custom_call.1} parent=1 // pred_check
      _
    $region19: #{tpu_custom_call.1} parent=1 // pred_check_branch
      %118 = sbr.rel (0) target = $region21
    $region20: #{tpu_custom_call.1} parent=1 // pred_region
      %119 = dma.done [#allocation4], 32
    $region21: #{tpu_custom_call.1} parent=1 // pred_fallthru
      _
    %120 = vsyncpa [#allocation4], 1

</llo_original>
